<compile_context>
chip_gen: v7x
topology: tpu7x:2x2x1
jax: 0.10.0
libtpu: 0.0.40
codegen_flags: <defaults>
</compile_context>

<pallas_src>
import functools

import jax
import jax.numpy as jnp
from jax import lax
from jax.experimental import pallas as pl
from jax.experimental.pallas import tpu as pltpu

NEG_SLOPE = 0.2  # GATConv default LeakyReLU negative slope


# ---------------------------------------------------------------------------
# kernel
# ---------------------------------------------------------------------------
def _gat_layer(x, adj_mask, p_ref, r0, f_in, heads, d, *, apply_elu):
    """One GATConv on VMEM-resident values.

    Parameters are read from the packed param ref `p_ref` at static row
    offsets:
      rows [r0, r0+H*F)           : W, per-head stacked, width D
      rows [r0+H*F, r0+H*F+H)     : att_dst  (one row per head, width D)
      rows [..,    .. + H)        : att_src
      row  r0+H*F+2H              : bias, width H*D
    Returns [N, H*D] (heads concatenated along lanes).
    """
    n = x.shape[0]
    hf = heads * f_in
    r_ad = r0 + hf           # att_dst rows
    r_as = r_ad + heads      # att_src rows
    r_b = r_as + heads       # bias row

    x_bf = x.astype(jnp.bfloat16)

    if heads == 1:
        # ---- single-head fast path (the module default: num_heads=[1,1]) ----
        w = p_ref[r0:r_ad, 0:d].astype(jnp.bfloat16)        # [F, D]
        a_dst = p_ref[r_ad:r_as, 0:d]                       # [1, D] f32
        a_src = p_ref[r_as:r_b, 0:d]                        # [1, D] f32
        bias = p_ref[r_b:r_b + 1, 0:d]                      # [1, D] f32

        # bf16 MXU matmul, f32 accumulation
        z = jnp.dot(x_bf, w, preferred_element_type=jnp.float32)     # [N, D]

        # both logit projections on the MXU (contract D axis of z directly)
        ed = lax.dot_general(z, a_dst, (((1,), (1,)), ((), ())),
                             preferred_element_type=jnp.float32)     # [N, 1]
        es = lax.dot_general(a_src, z, (((1,), (1,)), ((), ())),
                             preferred_element_type=jnp.float32)     # [1, N]

        e = ed + es                                                  # [N, N]
        e = jnp.where(e > 0, e, NEG_SLOPE * e)                       # leaky
        e = jnp.where(adj_mask, e, -1e30)

        # masked softmax over source nodes j (masked entries underflow to 0;
        # self-loops guarantee every row has a finite max)
        mx = jnp.max(e, axis=-1, keepdims=True)
        p = jnp.exp(e - mx)
        denom = jnp.sum(p, axis=-1, keepdims=True)
        alpha = p * pl.reciprocal(denom, approx=True)

        out = jnp.dot(alpha.astype(jnp.bfloat16), z.astype(jnp.bfloat16),
                      preferred_element_type=jnp.float32) + bias     # [N, D]
    else:
        # ---- head-batched path (no per-head lane slices of z) --------------
        w3 = p_ref[r0:r_ad, 0:d].reshape(heads, f_in, d)             # [H,F,D]
        w3 = w3.astype(jnp.bfloat16)
        a_dst = p_ref[r_ad:r_as, 0:d][:, None, :]                    # [H,1,D]
        a_src = p_ref[r_as:r_b, 0:d][:, None, :]                     # [H,1,D]
        bias = p_ref[r_b:r_b + 1, 0:heads * d]                       # [1,H*D]

        xb = jnp.broadcast_to(x_bf[None], (heads, n, f_in))          # [H,N,F]
        zb = jnp.einsum('hnf,hfd->hnd', xb, w3,
                        preferred_element_type=jnp.float32)          # [H,N,D]

        ed = jnp.einsum('hnd,hkd->hnk', zb, a_dst,
                        preferred_element_type=jnp.float32)          # [H,N,1]
        es = jnp.einsum('hkd,hnd->hkn', a_src, zb,
                        preferred_element_type=jnp.float32)          # [H,1,N]

        e = ed + es                                                  # [H,N,N]
        e = jnp.where(e > 0, e, NEG_SLOPE * e)
        e = jnp.where(adj_mask[None], e, -1e30)

        mx = jnp.max(e, axis=-1, keepdims=True)
        p = jnp.exp(e - mx)
        denom = jnp.sum(p, axis=-1, keepdims=True)
        alpha = p * pl.reciprocal(denom, approx=True)

        agg = jnp.einsum('hij,hjd->hid', alpha.astype(jnp.bfloat16),
                         zb.astype(jnp.bfloat16),
                         preferred_element_type=jnp.float32)         # [H,N,D]
        out = jnp.concatenate([agg[h] for h in range(heads)],
                              axis=-1) + bias                        # [N,H*D]

    if apply_elu:
        # clamp arg so the unselected branch never produces inf
        out = jnp.where(out > 0, out, jnp.exp(jnp.minimum(out, 0.0)) - 1.0)
    return out


def _gat_forward_kernel(x_ref, adj_ref, p_ref, out_ref, *, layer_meta):
    """Fused forward: all GATConv layers + ELU + log_softmax in one kernel."""
    adj_mask = adj_ref[...] != 0      # int8 -> bool, computed once, shared
    x = x_ref[...]
    num_layers = len(layer_meta)
    for li, (r0, f_in, heads, d) in enumerate(layer_meta):   # static unroll
        x = _gat_layer(x, adj_mask, p_ref, r0, f_in, heads, d,
                       apply_elu=(li < num_layers - 1))

    # log_softmax over classes (axis=-1)
    m = jnp.max(x, axis=-1, keepdims=True)
    s = x - m
    lse = jnp.log(jnp.sum(jnp.exp(s), axis=-1, keepdims=True))
    # TODO(synk): out lane width == num_classes (8) -> masked vst; negligible
    #             at N=64, pad/reblock only in the large-N version.
    out_ref[...] = s - lse


# ---------------------------------------------------------------------------
# wrapper
# ---------------------------------------------------------------------------
def _vmem_spec():
    return pl.BlockSpec(memory_space=pltpu.MemorySpace.VMEM)


def _pack_params(params):
    """Pack all layer params into one [R, C] f32 buffer (single DMA)."""
    c_max = max(int(a_src.shape[0]) * int(a_src.shape[1])
                for (_, a_src, _, _) in params)
    blocks, layer_meta = [], []
    row = 0
    for (w, att_src, att_dst, bias) in params:
        h, d = int(att_src.shape[0]), int(att_src.shape[1])
        f_in = int(w.shape[0])
        # per-head stacked weights: rows h*f_in, width d
        w_stacked = jnp.transpose(w.reshape(f_in, h, d),
                                  (1, 0, 2)).reshape(h * f_in, d)
        layer_meta.append((row, f_in, h, d))
        for blk in (w_stacked, att_dst, att_src, bias.reshape(1, h * d)):
            pad = c_max - blk.shape[1]
            if pad:
                blk = jnp.pad(blk, ((0, 0), (0, pad)))
            blocks.append(blk.astype(jnp.float32))
            row += blk.shape[0]
    packed = jnp.concatenate(blocks, axis=0)
    out_dim = int(params[-1][1].shape[0]) * int(params[-1][1].shape[1])
    return packed, tuple(layer_meta), out_dim


def _estimate_cost(n, params, out_dim):
    flops, transc = 0, 0
    nl = len(params)
    for li, (w, a_src, _a_dst, _b) in enumerate(params):
        h, d = int(a_src.shape[0]), int(a_src.shape[1])
        f_in = int(w.shape[0])
        flops += 2 * n * f_in * h * d      # x @ W
        flops += 4 * n * h * d             # e_dst / e_src projections
        flops += 2 * h * n * n * d         # alpha @ z
        flops += 6 * h * n * n             # leaky / mask / softmax elementwise
        transc += h * n * n + n * h        # exp + reciprocal
        if li < nl - 1:
            transc += n * h * d            # ELU exp
    flops += 4 * n * out_dim               # log_softmax elementwise
    transc += n * out_dim + n              # log_softmax exp + log
    return int(flops), int(transc)


def gat_forward(x, adj, params):
    """Full GAT forward pass in a single pallas_call.

    x: [N, F_in] float32; adj: [N, N] int8 dense mask (incl. self loops);
    params: list of (w:[F_in,H*D], att_src:[H,D], att_dst:[H,D], bias:[H*D]).
    """
    # TODO(synk): training-mode dropout (p=0.6) is stochastic; eval-mode
    #             semantics (dropout == identity) are implemented here.
    n = x.shape[0]
    x = x.astype(jnp.float32)
    adj_i8 = adj.astype(jnp.int8)
    packed, layer_meta, out_dim = _pack_params(params)

    flops, transc = _estimate_cost(n, params, out_dim)
    bytes_accessed = (x.size * 4 + adj_i8.size * 1 + packed.size * 4
                      + n * out_dim * 4)

    kern = functools.partial(_gat_forward_kernel, layer_meta=layer_meta)
    return pl.pallas_call(
        kern,
        out_shape=jax.ShapeDtypeStruct((n, out_dim), jnp.float32),
        in_specs=[_vmem_spec(), _vmem_spec(), _vmem_spec()],
        out_specs=_vmem_spec(),
        cost_estimate=pl.CostEstimate(flops=flops, transcendentals=transc,
                                      bytes_accessed=int(bytes_accessed)),
    )(x, adj_i8, packed)


# ---------------------------------------------------------------------------
# params / inputs / reference
# ---------------------------------------------------------------------------
def init_gat_params(key, input_dim, num_layers, hidden_dim, num_heads,
                    output_dim):
    if isinstance(hidden_dim, int):
        hidden_dim = [hidden_dim] * (num_layers - 1)
    if isinstance(num_heads, int):
        num_heads = [num_heads] * num_layers
    dims = []
    x_dim = input_dim
    for idx in range(num_layers - 1):
        dims.append((x_dim, hidden_dim[idx], num_heads[idx]))
        x_dim = hidden_dim[idx] * num_heads[idx]
    dims.append((x_dim, output_dim, 1))           # last GATConv: heads=1
    params = []
    for f_in, d, h in dims:
        key, k1, k2, k3 = jax.random.split(key, 4)
        w_scale = (6.0 / (f_in + h * d)) ** 0.5          # glorot-uniform
        w = jax.random.uniform(k1, (f_in, h * d), jnp.float32,
                               -w_scale, w_scale)
        a_scale = (6.0 / (d + 1)) ** 0.5
        att_src = jax.random.uniform(k2, (h, d), jnp.float32,
                                     -a_scale, a_scale)
        att_dst = jax.random.uniform(k3, (h, d), jnp.float32,
                                     -a_scale, a_scale)
        bias = jnp.zeros((h * d,), jnp.float32)
        params.append((w, att_src, att_dst, bias))
    return params


def build_adj(edge_idx, num_nodes):
    # dense int8 mask A[dst, src] = 1 for every edge src->dst, plus self-loops
    # (GATConv add_self_loops=True default).
    src, dst = edge_idx[0], edge_idx[1]
    adj = jnp.zeros((num_nodes, num_nodes), jnp.int8)
    adj = adj.at[dst, src].set(1)
    return jnp.maximum(adj, jnp.eye(num_nodes, dtype=jnp.int8))


def gat_reference(x, adj_i8, params):
    """Pure-JAX f32 reference (eval mode) for a loose numerical check."""
    mask = adj_i8 > 0
    h = x.astype(jnp.float32)
    nl = len(params)
    for li, (w, a_src, a_dst, b) in enumerate(params):
        nh, d = a_src.shape
        z = h @ w                                          # [N, H*D]
        z3 = z.reshape(-1, nh, d)
        ed = jnp.einsum('nhd,hd->nh', z3, a_dst)
        es = jnp.einsum('nhd,hd->nh', z3, a_src)
        e = ed[:, None, :] + es[None, :, :]                # [N_dst, N_src, H]
        e = jnp.where(e > 0, e, NEG_SLOPE * e)
        e = jnp.where(mask[:, :, None], e, -jnp.inf)
        alpha = jax.nn.softmax(e, axis=1)
        out = jnp.einsum('ijh,jhd->ihd', alpha, z3).reshape(-1, nh * d) + b
        h = jax.nn.elu(out) if li < nl - 1 else out
    return jax.nn.log_softmax(h, axis=-1)


if __name__ == "__main__":
    key = jax.random.PRNGKey(0)
    N, F_IN, HIDDEN, OUT, E = 64, 16, 32, 8, 256

    key, kx, ke, kp = jax.random.split(key, 4)
    x = jax.random.normal(kx, (N, F_IN), jnp.float32)
    edge_idx = jax.random.randint(ke, (2, E), 0, N)          # [2, E] src/dst
    adj = build_adj(edge_idx, N)

    params = init_gat_params(kp, input_dim=F_IN, num_layers=2,
                             hidden_dim=[HIDDEN], num_heads=[1, 1],
                             output_dim=OUT)

    out = gat_forward(x, adj, params)
    out = jax.block_until_ready(out)
    assert out.shape == (N, OUT)
    assert bool(jnp.all(jnp.isfinite(out)))

    # loose check vs f32 reference (kernel uses bf16 MXU operands + approx
    # reciprocal, so tolerance is wide but far below class-logit scale)
    ref = jax.block_until_ready(gat_reference(x, adj, params))
    assert float(jnp.max(jnp.abs(out - ref))) < 0.3

    print("KERNEL_OK")
</pallas_src>

<mosaic_0001>
module attributes {stable_mosaic.version = 11 : i64} {
  func.func @_gat_forward_kernel(%arg0: memref<64x16xf32, #tpu.memory_space<vmem>>, %arg1: memref<64x64xi8, #tpu.memory_space<vmem>>, %arg2: memref<54x32xf32, #tpu.memory_space<vmem>>, %arg3: memref<64x8xf32, #tpu.memory_space<vmem>>) attributes {dimension_semantics = [], scalar_prefetch = 0 : i64, scratch_operands = 0 : i64, tpu.core_type = #tpu.core_type<tc>} {
    %c0 = arith.constant 0 : index
    %c0_0 = arith.constant 0 : index
    %0 = vector.load %arg1[%c0, %c0_0] : memref<64x64xi8, #tpu.memory_space<vmem>>, vector<64x64xi8>
    %c0_i8 = arith.constant 0 : i8
    %1 = vector.broadcast %c0_i8 : i8 to vector<64x64xi8>
    %2 = arith.cmpi ne, %0, %1 : vector<64x64xi8>
    %c0_1 = arith.constant 0 : index
    %c0_2 = arith.constant 0 : index
    %3 = vector.load %arg0[%c0_1, %c0_2] : memref<64x16xf32, #tpu.memory_space<vmem>>, vector<64x16xf32>
    %4 = arith.truncf %3 : vector<64x16xf32> to vector<64x16xbf16>
    %c0_3 = arith.constant 0 : index
    %c0_4 = arith.constant 0 : index
    %5 = vector.load %arg2[%c0_3, %c0_4] : memref<54x32xf32, #tpu.memory_space<vmem>>, vector<16x32xf32>
    %6 = arith.truncf %5 : vector<16x32xf32> to vector<16x32xbf16>
    %c16 = arith.constant 16 : index
    %c0_5 = arith.constant 0 : index
    %7 = vector.load %arg2[%c16, %c0_5] : memref<54x32xf32, #tpu.memory_space<vmem>>, vector<1x32xf32>
    %c17 = arith.constant 17 : index
    %c0_6 = arith.constant 0 : index
    %8 = vector.load %arg2[%c17, %c0_6] : memref<54x32xf32, #tpu.memory_space<vmem>>, vector<1x32xf32>
    %c18 = arith.constant 18 : index
    %c0_7 = arith.constant 0 : index
    %9 = vector.load %arg2[%c18, %c0_7] : memref<54x32xf32, #tpu.memory_space<vmem>>, vector<1x32xf32>
    %cst = arith.constant dense<0.000000e+00> : vector<64x32xf32>
    %10 = tpu.matmul %4, %6, %cst {dimension_numbers = #tpu.dot_dimension_numbers<[1], [0], [0], [1], [0, 0, 1, 1], [], []>} : vector<64x16xbf16>, vector<16x32xbf16>, vector<64x32xf32> -> vector<64x32xf32>
    %cst_8 = arith.constant dense<0.000000e+00> : vector<64x1xf32>
    %11 = tpu.matmul %10, %7, %cst_8 {dimension_numbers = #tpu.dot_dimension_numbers<[1], [1], [0], [0], [0, 0, 1, 0], [], []>} : vector<64x32xf32>, vector<1x32xf32>, vector<64x1xf32> -> vector<64x1xf32>
    %cst_9 = arith.constant dense<0.000000e+00> : vector<1x64xf32>
    %12 = tpu.matmul %8, %10, %cst_9 {dimension_numbers = #tpu.dot_dimension_numbers<[1], [1], [0], [0], [0, 0, 1, 0], [], []>} : vector<1x32xf32>, vector<64x32xf32>, vector<1x64xf32> -> vector<1x64xf32>
    %13 = vector.broadcast %11 : vector<64x1xf32> to vector<64x64xf32>
    %14 = vector.broadcast %12 : vector<1x64xf32> to vector<64x64xf32>
    %15 = arith.addf %13, %14 : vector<64x64xf32>
    %cst_10 = arith.constant 0.000000e+00 : f32
    %16 = vector.broadcast %cst_10 : f32 to vector<64x64xf32>
    %17 = arith.cmpf ogt, %15, %16 : vector<64x64xf32>
    %cst_11 = arith.constant 2.000000e-01 : f32
    %18 = vector.broadcast %cst_11 : f32 to vector<64x64xf32>
    %19 = arith.mulf %18, %15 : vector<64x64xf32>
    %20 = arith.select %17, %15, %19 : vector<64x64xi1>, vector<64x64xf32>
    %cst_12 = arith.constant -1.000000e+30 : f32
    %21 = vector.broadcast %cst_12 : f32 to vector<64x64xf32>
    %22 = arith.select %2, %20, %21 : vector<64x64xi1>, vector<64x64xf32>
    %cst_13 = arith.constant dense<0xFF800000> : vector<64xf32>
    %23 = vector.multi_reduction <maximumf>, %22, %cst_13 [1] : vector<64x64xf32> to vector<64xf32>
    %24 = vector.shape_cast %23 : vector<64xf32> to vector<64x1xf32>
    %25 = vector.broadcast %24 : vector<64x1xf32> to vector<64x64xf32>
    %26 = arith.subf %22, %25 : vector<64x64xf32>
    %27 = math.exp %26 : vector<64x64xf32>
    %cst_14 = arith.constant dense<0.000000e+00> : vector<64xf32>
    %28 = vector.multi_reduction <add>, %27, %cst_14 [1] : vector<64x64xf32> to vector<64xf32>
    %29 = vector.shape_cast %28 : vector<64xf32> to vector<64x1xf32>
    %30 = tpu.reciprocal %29 {approx = true} : vector<64x1xf32> -> vector<64x1xf32>
    %31 = vector.broadcast %30 : vector<64x1xf32> to vector<64x64xf32>
    %32 = arith.mulf %27, %31 : vector<64x64xf32>
    %33 = arith.truncf %32 : vector<64x64xf32> to vector<64x64xbf16>
    %34 = arith.truncf %10 : vector<64x32xf32> to vector<64x32xbf16>
    %cst_15 = arith.constant dense<0.000000e+00> : vector<64x32xf32>
    %35 = tpu.matmul %33, %34, %cst_15 {dimension_numbers = #tpu.dot_dimension_numbers<[1], [0], [0], [1], [0, 0, 1, 1], [], []>} : vector<64x64xbf16>, vector<64x32xbf16>, vector<64x32xf32> -> vector<64x32xf32>
    %36 = vector.broadcast %9 : vector<1x32xf32> to vector<64x32xf32>
    %37 = arith.addf %35, %36 : vector<64x32xf32>
    %cst_16 = arith.constant 0.000000e+00 : f32
    %38 = vector.broadcast %cst_16 : f32 to vector<64x32xf32>
    %39 = arith.cmpf ogt, %37, %38 : vector<64x32xf32>
    %cst_17 = arith.constant 0.000000e+00 : f32
    %40 = vector.broadcast %cst_17 : f32 to vector<64x32xf32>
    %41 = arith.minimumf %37, %40 : vector<64x32xf32>
    %42 = math.exp %41 : vector<64x32xf32>
    %cst_18 = arith.constant 1.000000e+00 : f32
    %43 = vector.broadcast %cst_18 : f32 to vector<64x32xf32>
    %44 = arith.subf %42, %43 : vector<64x32xf32>
    %45 = arith.select %39, %37, %44 : vector<64x32xi1>, vector<64x32xf32>
    %46 = arith.truncf %45 : vector<64x32xf32> to vector<64x32xbf16>
    %c19 = arith.constant 19 : index
    %c0_19 = arith.constant 0 : index
    %47 = vector.load %arg2[%c19, %c0_19] : memref<54x32xf32, #tpu.memory_space<vmem>>, vector<32x8xf32>
    %48 = arith.truncf %47 : vector<32x8xf32> to vector<32x8xbf16>
    %c51 = arith.constant 51 : index
    %c0_20 = arith.constant 0 : index
    %49 = vector.load %arg2[%c51, %c0_20] : memref<54x32xf32, #tpu.memory_space<vmem>>, vector<1x8xf32>
    %c52 = arith.constant 52 : index
    %c0_21 = arith.constant 0 : index
    %50 = vector.load %arg2[%c52, %c0_21] : memref<54x32xf32, #tpu.memory_space<vmem>>, vector<1x8xf32>
    %c53 = arith.constant 53 : index
    %c0_22 = arith.constant 0 : index
    %51 = vector.load %arg2[%c53, %c0_22] : memref<54x32xf32, #tpu.memory_space<vmem>>, vector<1x8xf32>
    %cst_23 = arith.constant dense<0.000000e+00> : vector<64x8xf32>
    %52 = tpu.matmul %46, %48, %cst_23 {dimension_numbers = #tpu.dot_dimension_numbers<[1], [0], [0], [1], [0, 0, 1, 1], [], []>} : vector<64x32xbf16>, vector<32x8xbf16>, vector<64x8xf32> -> vector<64x8xf32>
    %cst_24 = arith.constant dense<0.000000e+00> : vector<64x1xf32>
    %53 = tpu.matmul %52, %49, %cst_24 {dimension_numbers = #tpu.dot_dimension_numbers<[1], [1], [0], [0], [0, 0, 1, 0], [], []>} : vector<64x8xf32>, vector<1x8xf32>, vector<64x1xf32> -> vector<64x1xf32>
    %cst_25 = arith.constant dense<0.000000e+00> : vector<1x64xf32>
    %54 = tpu.matmul %50, %52, %cst_25 {dimension_numbers = #tpu.dot_dimension_numbers<[1], [1], [0], [0], [0, 0, 1, 0], [], []>} : vector<1x8xf32>, vector<64x8xf32>, vector<1x64xf32> -> vector<1x64xf32>
    %55 = vector.broadcast %53 : vector<64x1xf32> to vector<64x64xf32>
    %56 = vector.broadcast %54 : vector<1x64xf32> to vector<64x64xf32>
    %57 = arith.addf %55, %56 : vector<64x64xf32>
    %cst_26 = arith.constant 0.000000e+00 : f32
    %58 = vector.broadcast %cst_26 : f32 to vector<64x64xf32>
    %59 = arith.cmpf ogt, %57, %58 : vector<64x64xf32>
    %cst_27 = arith.constant 2.000000e-01 : f32
    %60 = vector.broadcast %cst_27 : f32 to vector<64x64xf32>
    %61 = arith.mulf %60, %57 : vector<64x64xf32>
    %62 = arith.select %59, %57, %61 : vector<64x64xi1>, vector<64x64xf32>
    %cst_28 = arith.constant -1.000000e+30 : f32
    %63 = vector.broadcast %cst_28 : f32 to vector<64x64xf32>
    %64 = arith.select %2, %62, %63 : vector<64x64xi1>, vector<64x64xf32>
    %cst_29 = arith.constant dense<0xFF800000> : vector<64xf32>
    %65 = vector.multi_reduction <maximumf>, %64, %cst_29 [1] : vector<64x64xf32> to vector<64xf32>
    %66 = vector.shape_cast %65 : vector<64xf32> to vector<64x1xf32>
    %67 = vector.broadcast %66 : vector<64x1xf32> to vector<64x64xf32>
    %68 = arith.subf %64, %67 : vector<64x64xf32>
    %69 = math.exp %68 : vector<64x64xf32>
    %cst_30 = arith.constant dense<0.000000e+00> : vector<64xf32>
    %70 = vector.multi_reduction <add>, %69, %cst_30 [1] : vector<64x64xf32> to vector<64xf32>
    %71 = vector.shape_cast %70 : vector<64xf32> to vector<64x1xf32>
    %72 = tpu.reciprocal %71 {approx = true} : vector<64x1xf32> -> vector<64x1xf32>
    %73 = vector.broadcast %72 : vector<64x1xf32> to vector<64x64xf32>
    %74 = arith.mulf %69, %73 : vector<64x64xf32>
    %75 = arith.truncf %74 : vector<64x64xf32> to vector<64x64xbf16>
    %76 = arith.truncf %52 : vector<64x8xf32> to vector<64x8xbf16>
    %cst_31 = arith.constant dense<0.000000e+00> : vector<64x8xf32>
    %77 = tpu.matmul %75, %76, %cst_31 {dimension_numbers = #tpu.dot_dimension_numbers<[1], [0], [0], [1], [0, 0, 1, 1], [], []>} : vector<64x64xbf16>, vector<64x8xbf16>, vector<64x8xf32> -> vector<64x8xf32>
    %78 = vector.broadcast %51 : vector<1x8xf32> to vector<64x8xf32>
    %79 = arith.addf %77, %78 : vector<64x8xf32>
    %cst_32 = arith.constant dense<0xFF800000> : vector<64xf32>
    %80 = vector.multi_reduction <maximumf>, %79, %cst_32 [1] : vector<64x8xf32> to vector<64xf32>
    %81 = vector.shape_cast %80 : vector<64xf32> to vector<64x1xf32>
    %82 = vector.broadcast %81 : vector<64x1xf32> to vector<64x8xf32>
    %83 = arith.subf %79, %82 : vector<64x8xf32>
    %84 = math.exp %83 : vector<64x8xf32>
    %cst_33 = arith.constant dense<0.000000e+00> : vector<64xf32>
    %85 = vector.multi_reduction <add>, %84, %cst_33 [1] : vector<64x8xf32> to vector<64xf32>
    %86 = vector.shape_cast %85 : vector<64xf32> to vector<64x1xf32>
    %87 = math.log %86 : vector<64x1xf32>
    %88 = vector.broadcast %87 : vector<64x1xf32> to vector<64x8xf32>
    %89 = arith.subf %83, %88 : vector<64x8xf32>
    %c0_34 = arith.constant 0 : index
    %c0_35 = arith.constant 0 : index
    %90 = vector.load %arg3[%c0_34, %c0_35] : memref<64x8xf32, #tpu.memory_space<vmem>>, vector<64x8xf32>
    tpu.vector_store %arg3[%c0_34, %c0_35], %89 {strides = array<i32>} : memref<64x8xf32, #tpu.memory_space<vmem>>, vector<64x8xf32>,
    return
  }
}

</mosaic_0001>

<llo_original>
// kernel: tpu_custom_call.1
$region0: #{tpu_custom_call.1}
  #allocation0 [shape = 'u32[]', space=smem, size = 0x4, offset = 0x4, fixed_abs, tag = 'smem constant byte address 0x4 - core index']
  #allocation1 [shape = 'u32[144,128]{1,0:T(1,128)}', space=vmem, size = 0x12000, scoped, tag = 'internal scratch']
  %s0 = inlined_call_operand.vmem [shape: f32[64,16], index: 0, kind: input, shape index: {}]
  %s1 = inlined_call_operand.vmem [shape: s8[64,64], index: 1, kind: input, shape index: {}]
  %s2 = inlined_call_operand.vmem [shape: f32[54,32], index: 2, kind: input, shape index: {}]
  %s3 = inlined_call_operand.vmem [shape: f32[64,8], index: 3, kind: output, shape index: {}]
  %s4 = sld [smem:[#allocation0]]
  $region22: #{tpu_custom_call.1} parent=0
    _
  %s6 = ssub.s32 1, %s4
  %s7 = scalar_select 0, %s6, %s4
  // Predicated region
  $region2: #{tpu_custom_call.1} parent=0 // pred_check
    _
  $region3: #{tpu_custom_call.1} parent=0 // pred_check_branch
    %9 = sbr.rel (0) target = $region5
  $region4: #{tpu_custom_call.1} parent=0 // pred_region
    _
  $region5: #{tpu_custom_call.1} parent=0 // pred_fallthru
    _
  // Predicated region
  $region6: #{tpu_custom_call.1} parent=0 // pred_check
    _
  $region7: #{tpu_custom_call.1} parent=0 // pred_check_branch
    %11 = sbr.rel (0) target = $region9
  $region8: #{tpu_custom_call.1} parent=0 // pred_region
    _
  $region9: #{tpu_custom_call.1} parent=0 // pred_fallthru
    _
  // Predicated region
  $region10: #{tpu_custom_call.1} parent=0 // pred_check
    _
  $region11: #{tpu_custom_call.1} parent=0 // pred_check_branch
    %13 = sbr.rel (0) target = $region13
  $region12: #{tpu_custom_call.1} parent=0 // pred_region
    _
  $region13: #{tpu_custom_call.1} parent=0 // pred_fallthru
    _
  %v17 = vld [vmem:[%s1] sm:$0xff]
  %v18 = vld [vmem:[%s1 + $0x8] sm:$0xff]
  %vm19 = vnez %v17
  %vm20 = vnez %v18
  %v21 = vld [vmem:[%s0] sm:$0xff]
  %v22 = vld [vmem:[%s0 + $0x8] sm:$0xff]
  %v23 = vld [vmem:[%s0 + $0x10] sm:$0xff]
  %v24 = vld [vmem:[%s0 + $0x18] sm:$0xff]
  %v25 = vld [vmem:[%s0 + $0x20] sm:$0xff]
  %v26 = vld [vmem:[%s0 + $0x28] sm:$0xff]
  %v27 = vld [vmem:[%s0 + $0x30] sm:$0xff]
  %v28 = vld [vmem:[%s0 + $0x38] sm:$0xff]
  %v29 = vpack.c.bf16 %v22, %v21
  %v30 = vpack.c.bf16 %v24, %v23
  %v31 = vpack.c.bf16 %v26, %v25
  %v32 = vpack.c.bf16 %v28, %v27
  %v33 = vld [vmem:[%s2] sm:$0xff]
  %v34 = vld [vmem:[%s2 + $0x8] sm:$0xff]
  %v35 = vpack.c.bf16 %v34, %v33
  %v36 = vld [vmem:[%s2 + $0x10] sm:$0x1]
  %v37 = vld [vmem:[%s2 + $0x11] sm:$0x1]
  %v38 = vld [vmem:[%s2 + $0x12] sm:$0x1]
  %vm39 = vcmask 130048
  %v41 = vsel %vm39, %v29, 0
  %v44 = vsel %vm39, %v30, 0
  %v47 = vsel %vm39, %v31, 0
  %v50 = vsel %vm39, %v32, 0
  %52 = vmatprep.subr.bf16.mxu0 0
  %53 = vmatpush1.bf16.msra.mxu0 %v35
  %54 = vmatprep.subr.bf16.mxu0 0
  %55 = vmatpush1.bf16.msra.mxu0 0
  %56 = vmatprep.subr.bf16.mxu0 0
  %57 = vmatpush1.bf16.msra.mxu0 0
  %58 = vmatprep.subr.bf16.mxu0 0
  %59 = vmatpush1.bf16.msra.mxu0 0
  %60 = vmatprep.subr.bf16.mxu0 0
  %61 = vmatpush1.bf16.msra.mxu0 0
  %62 = vmatprep.subr.bf16.mxu0 0
  %63 = vmatpush1.bf16.msra.mxu0 0
  %64 = vmatprep.subr.bf16.mxu0 0
  %65 = vmatpush1.bf16.msra.mxu0 0
  %66 = vmatprep.subr.bf16.mxu0 0
  %67 = vmatpush1.bf16.msra.mxu0 0
  %68 = vmatprep.subr.bf16.mxu0 0
  %69 = vmatpush1.bf16.msra.mxu0 0
  %70 = vmatprep.subr.bf16.mxu0 0
  %71 = vmatpush1.bf16.msra.mxu0 0
  %72 = vmatprep.subr.bf16.mxu0 0
  %73 = vmatpush1.bf16.msra.mxu0 0
  %74 = vmatprep.subr.bf16.mxu0 0
  %75 = vmatpush1.bf16.msra.mxu0 0
  %76 = vmatprep.subr.bf16.mxu0 0
  %77 = vmatpush1.bf16.msra.mxu0 0
  %78 = vmatprep.subr.bf16.mxu0 0
  %79 = vmatpush1.bf16.msra.mxu0 0
  %80 = vmatprep.subr.bf16.mxu0 0
  %81 = vmatpush1.bf16.msra.mxu0 0
  %82 = vmatprep.subr.bf16.mxu0 0
  %83 = vmatpush1.bf16.msra.mxu0 0
  %84 = vmatprep.mubr.bf16.mxu0 0
  %85 = vmatmul.mubr.bf16.gmra.mrb[0].mxu0 %v41
  %v86 = vpop.f32.mrb[0].mxu0
  %v87 = vadd.f32 0.0, %v86
  %v88 = vpop.f32.mrb[0].mxu0
  %v89 = vpop.f32.mrb[0].mxu0
  %v90 = vadd.f32 0.0, %v89
  %v91 = vpop.f32.mrb[0].mxu0
  %92 = vmatprep.mubr.bf16.mxu0 0
  %93 = vmatmul.mubr.bf16.gmra.mrb[0].mxu0 %v44
  %v94 = vpop.f32.mrb[0].mxu0
  %v95 = vadd.f32 0.0, %v94
  %v96 = vpop.f32.mrb[0].mxu0
  %v97 = vpop.f32.mrb[0].mxu0
  %v98 = vadd.f32 0.0, %v97
  %v99 = vpop.f32.mrb[0].mxu0
  %100 = vmatprep.mubr.bf16.mxu0 0
  %101 = vmatmul.mubr.bf16.gmra.mrb[0].mxu0 %v47
  %v102 = vpop.f32.mrb[0].mxu0
  %v103 = vadd.f32 0.0, %v102
  %v104 = vpop.f32.mrb[0].mxu0
  %v105 = vpop.f32.mrb[0].mxu0
  %v106 = vadd.f32 0.0, %v105
  %v107 = vpop.f32.mrb[0].mxu0
  %108 = vmatprep.mubr.bf16.mxu0 0
  %109 = vmatmul.mubr.bf16.gmra.mrb[0].mxu0 %v50
  %v110 = vpop.f32.mrb[0].mxu0
  %v111 = vadd.f32 0.0, %v110
  %v112 = vpop.f32.mrb[0].mxu0
  %v113 = vpop.f32.mrb[0].mxu0
  %v114 = vadd.f32 0.0, %v113
  %v115 = vpop.f32.mrb[0].mxu0
  %116 = vdwg.mxu0
  %v117 = vlaneseq
  %v118 = vshrl.u32 %v117, 7
  %v119 = vsub.s32 0, %v118
  %v120 = vrot.slane %v36, %v119
  %v121 = vmul.f32 %v87, %v120
  %v122 = vmul.f32 %v90, %v120
  %v123 = vmul.f32 %v95, %v120
  %v124 = vmul.f32 %v98, %v120
  %v125 = vmul.f32 %v103, %v120
  %v126 = vmul.f32 %v106, %v120
  %v127 = vmul.f32 %v111, %v120
  %v128 = vmul.f32 %v114, %v120
  %vm129 = vcmask 261120
  %v130 = vsel %vm129, %v121, 0.0
  %131 = vadd.xlane.f32.xlu0 %v130
  %v132 = vpop.xlane.xlu0 %131
  %v133 = vsel %vm129, %v122, 0.0
  %134 = vadd.xlane.f32.xlu0 %v133
  %v135 = vpop.xlane.xlu0 %134
  %v136 = vsel %vm129, %v123, 0.0
  %137 = vadd.xlane.f32.xlu0 %v136
  %v138 = vpop.xlane.xlu0 %137
  %v139 = vsel %vm129, %v124, 0.0
  %140 = vadd.xlane.f32.xlu0 %v139
  %v141 = vpop.xlane.xlu0 %140
  %v142 = vsel %vm129, %v125, 0.0
  %143 = vadd.xlane.f32.xlu0 %v142
  %v144 = vpop.xlane.xlu0 %143
  %v145 = vsel %vm129, %v126, 0.0
  %146 = vadd.xlane.f32.xlu0 %v145
  %v147 = vpop.xlane.xlu0 %146
  %v148 = vsel %vm129, %v127, 0.0
  %149 = vadd.xlane.f32.xlu0 %v148
  %v150 = vpop.xlane.xlu0 %149
  %v151 = vsel %vm129, %v128, 0.0
  %152 = vadd.xlane.f32.xlu0 %v151
  %v153 = vpop.xlane.xlu0 %152
  %v155 = vsel %vm129, %v37, 0
  %v158 = vsel %vm129, %v87, 0
  %v161 = vsel %vm129, %v90, 0
  %v164 = vsel %vm129, %v95, 0
  %v167 = vsel %vm129, %v98, 0
  %v170 = vsel %vm129, %v103, 0
  %v173 = vsel %vm129, %v106, 0
  %v176 = vsel %vm129, %v111, 0
  %v179 = vsel %vm129, %v114, 0
  %181 = vmatprep.subr.mxu0 0.0
  %182 = vmatpush1.xpose.msra.mxu0 %v158
  %183 = vmatprep.subr.mxu0 0.0
  %184 = vmatpush1.xpose.msra.mxu0 %v161
  %185 = vmatprep.subr.mxu0 0.0
  %186 = vmatpush1.xpose.msra.mxu0 %v164
  %187 = vmatprep.subr.mxu0 0.0
  %188 = vmatpush1.xpose.msra.mxu0 %v167
  %189 = vmatprep.subr.mxu0 0.0
  %190 = vmatpush1.xpose.msra.mxu0 %v170
  %191 = vmatprep.subr.mxu0 0.0
  %192 = vmatpush1.xpose.msra.mxu0 %v173
  %193 = vmatprep.subr.mxu0 0.0
  %194 = vmatpush1.xpose.msra.mxu0 %v176
  %195 = vmatprep.subr.mxu0 0.0
  %196 = vmatpush1.xpose.msra.mxu0 %v179
  %197 = vmatprep.subr.mxu0 0.0
  %198 = vmatpush1.xpose.msra.mxu0 0.0
  %199 = vmatprep.subr.mxu0 0.0
  %200 = vmatpush1.xpose.msra.mxu0 0.0
  %201 = vmatprep.subr.mxu0 0.0
  %202 = vmatpush1.xpose.msra.mxu0 0.0
  %203 = vmatprep.subr.mxu0 0.0
  %204 = vmatpush1.xpose.msra.mxu0 0.0
  %205 = vmatprep.subr.mxu0 0.0
  %206 = vmatpush1.xpose.msra.mxu0 0.0
  %207 = vmatprep.subr.mxu0 0.0
  %208 = vmatpush1.xpose.msra.mxu0 0.0
  %209 = vmatprep.subr.mxu0 0.0
  %210 = vmatpush1.xpose.msra.mxu0 0.0
  %211 = vmatprep.subr.mxu0 0.0
  %212 = vmatpush1.xpose.msra.mxu0 0.0
  %213 = vmatprep.subr.mxu0 0.0
  %214 = vmatpush1.xpose.msra.mxu0 0.0
  %215 = vmatprep.subr.mxu0 0.0
  %216 = vmatpush1.xpose.msra.mxu0 0.0
  %217 = vmatprep.subr.mxu0 0.0
  %218 = vmatpush1.xpose.msra.mxu0 0.0
  %219 = vmatprep.subr.mxu0 0.0
  %220 = vmatpush1.xpose.msra.mxu0 0.0
  %221 = vmatprep.subr.mxu0 0.0
  %222 = vmatpush1.xpose.msra.mxu0 0.0
  %223 = vmatprep.subr.mxu0 0.0
  %224 = vmatpush1.xpose.msra.mxu0 0.0
  %225 = vmatprep.subr.mxu0 0.0
  %226 = vmatpush1.xpose.msra.mxu0 0.0
  %227 = vmatprep.subr.mxu0 0.0
  %228 = vmatpush1.xpose.msra.mxu0 0.0
  %229 = vmatprep.subr.mxu0 0.0
  %230 = vmatpush1.xpose.msra.mxu0 0.0
  %231 = vmatprep.subr.mxu0 0.0
  %232 = vmatpush1.xpose.msra.mxu0 0.0
  %233 = vmatprep.subr.mxu0 0.0
  %234 = vmatpush1.xpose.msra.mxu0 0.0
  %235 = vmatprep.subr.mxu0 0.0
  %236 = vmatpush1.xpose.msra.mxu0 0.0
  %237 = vmatprep.subr.mxu0 0.0
  %238 = vmatpush1.xpose.msra.mxu0 0.0
  %239 = vmatprep.subr.mxu0 0.0
  %240 = vmatpush1.xpose.msra.mxu0 0.0
  %241 = vmatprep.subr.mxu0 0.0
  %242 = vmatpush1.xpose.msra.mxu0 0.0
  %243 = vmatprep.subr.mxu0 0.0
  %244 = vmatpush1.xpose.msra.mxu0 0.0
  %245 = vmatprep.mubr.f32.mxu0 0.0
  %246 = vmatmul.mubr.f32.gmra.mrb[0].mxu0 %v155
  %v247 = vpop.f32.mrb[0].mxu0
  %v248 = vadd.f32 0.0, %v247
  %v249 = vpop.f32.mrb[0].mxu0
  %250 = vdwg.mxu0
  %v251 = vlaneseq
  %v252 = vshrl.u32 %v251, 7
  %v253 = vsub.s32 0, %v252
  %v254 = vrot.slane %v248, %v253
  %v255 = vadd.f32 %v132, %v254
  %v256 = vadd.f32 %v135, %v254
  %v257 = vadd.f32 %v138, %v254
  %v258 = vadd.f32 %v141, %v254
  %v259 = vadd.f32 %v144, %v254
  %v260 = vadd.f32 %v147, %v254
  %v261 = vadd.f32 %v150, %v254
  %v262 = vadd.f32 %v153, %v254
  %vm263 = vcmp.gt.f32.partialorder %v255, 0.0
  %vm264 = vcmp.gt.f32.partialorder %v256, 0.0
  %vm265 = vcmp.gt.f32.partialorder %v257, 0.0
  %vm266 = vcmp.gt.f32.partialorder %v258, 0.0
  %vm267 = vcmp.gt.f32.partialorder %v259, 0.0
  %vm268 = vcmp.gt.f32.partialorder %v260, 0.0
  %vm269 = vcmp.gt.f32.partialorder %v261, 0.0
  %vm270 = vcmp.gt.f32.partialorder %v262, 0.0
  %v271 = vmul.f32 %v255, 0.2
  %v272 = vmul.f32 %v256, 0.2
  %v273 = vmul.f32 %v257, 0.2
  %v274 = vmul.f32 %v258, 0.2
  %v275 = vmul.f32 %v259, 0.2
  %v276 = vmul.f32 %v260, 0.2
  %v277 = vmul.f32 %v261, 0.2
  %v278 = vmul.f32 %v262, 0.2
  %v279 = vsel %vm263, %v255, %v271
  %v280 = vsel %vm264, %v256, %v272
  %v281 = vsel %vm265, %v257, %v273
  %v282 = vsel %vm266, %v258, %v274
  %v283 = vsel %vm267, %v259, %v275
  %v284 = vsel %vm268, %v260, %v276
  %v285 = vsel %vm269, %v261, %v277
  %v286 = vsel %vm270, %v262, %v278
  %v287 = vsel %vm19, 16843009, 0
  %v288 = vsel %vm20, 16843009, 0
  %v289 = vunpack.c.0.s8 %v287
  %v290 = vunpack.c.1.s8 %v287
  %v291 = vunpack.c.2.s8 %v287
  %v292 = vunpack.c.3.s8 %v287
  %v293 = vunpack.c.0.s8 %v288
  %v294 = vunpack.c.1.s8 %v288
  %v295 = vunpack.c.2.s8 %v288
  %v296 = vunpack.c.3.s8 %v288
  %v297 = vpack.c.b16 %v289, %v289
  %v298 = vpack.c.b8 %v297, %v297
  %v299 = vpack.c.b16 %v290, %v290
  %v300 = vpack.c.b8 %v299, %v299
  %v301 = vpack.c.b16 %v291, %v291
  %v302 = vpack.c.b8 %v301, %v301
  %v303 = vpack.c.b16 %v292, %v292
  %v304 = vpack.c.b8 %v303, %v303
  %v305 = vpack.c.b16 %v293, %v293
  %v306 = vpack.c.b8 %v305, %v305
  %v307 = vpack.c.b16 %v294, %v294
  %v308 = vpack.c.b8 %v307, %v307
  %v309 = vpack.c.b16 %v295, %v295
  %v310 = vpack.c.b8 %v309, %v309
  %v311 = vpack.c.b16 %v296, %v296
  %v312 = vpack.c.b8 %v311, %v311
  %vm313 = vnez %v298
  %vm314 = vnez %v300
  %vm315 = vnez %v302
  %vm316 = vnez %v304
  %vm317 = vnez %v306
  %vm318 = vnez %v308
  %vm319 = vnez %v310
  %vm320 = vnez %v312
  %v321 = vsel %vm313, 16843009, 0
  %v322 = vsel %vm314, 16843009, 0
  %v323 = vsel %vm315, 16843009, 0
  %v324 = vsel %vm316, 16843009, 0
  %v325 = vsel %vm317, 16843009, 0
  %v326 = vsel %vm318, 16843009, 0
  %v327 = vsel %vm319, 16843009, 0
  %v328 = vsel %vm320, 16843009, 0
  %v329 = vunpack.c.0.s8 %v321
  %v330 = vunpack.c.0.s8 %v322
  %v331 = vunpack.c.0.s8 %v323
  %v332 = vunpack.c.0.s8 %v324
  %v333 = vunpack.c.0.s8 %v325
  %v334 = vunpack.c.0.s8 %v326
  %v335 = vunpack.c.0.s8 %v327
  %v336 = vunpack.c.0.s8 %v328
  %vm337 = vcmp.ne.s32.totalorder %v329, 0
  %vm338 = vcmp.ne.s32.totalorder %v330, 0
  %vm339 = vcmp.ne.s32.totalorder %v331, 0
  %vm340 = vcmp.ne.s32.totalorder %v332, 0
  %vm341 = vcmp.ne.s32.totalorder %v333, 0
  %vm342 = vcmp.ne.s32.totalorder %v334, 0
  %vm343 = vcmp.ne.s32.totalorder %v335, 0
  %vm344 = vcmp.ne.s32.totalorder %v336, 0
  %v345 = vsel %vm337, %v279, -1e+30
  %v346 = vsel %vm338, %v280, -1e+30
  %v347 = vsel %vm339, %v281, -1e+30
  %v348 = vsel %vm340, %v282, -1e+30
  %v349 = vsel %vm341, %v283, -1e+30
  %v350 = vsel %vm342, %v284, -1e+30
  %v351 = vsel %vm343, %v285, -1e+30
  %v352 = vsel %vm344, %v286, -1e+30
  %vm353 = vcmask 523264
  %v354 = vsel %vm353, %v345, -inf
  %355 = vmax.xlane.f32.xlu0 %v354
  %v356 = vpop.xlane.xlu0 %355
  %v357 = vsel %vm353, %v346, -inf
  %358 = vmax.xlane.f32.xlu0 %v357
  %v359 = vpop.xlane.xlu0 %358
  %v360 = vsel %vm353, %v347, -inf
  %361 = vmax.xlane.f32.xlu0 %v360
  %v362 = vpop.xlane.xlu0 %361
  %v363 = vsel %vm353, %v348, -inf
  %364 = vmax.xlane.f32.xlu0 %v363
  %v365 = vpop.xlane.xlu0 %364
  %v366 = vsel %vm353, %v349, -inf
  %367 = vmax.xlane.f32.xlu0 %v366
  %v368 = vpop.xlane.xlu0 %367
  %v369 = vsel %vm353, %v350, -inf
  %370 = vmax.xlane.f32.xlu0 %v369
  %v371 = vpop.xlane.xlu0 %370
  %v372 = vsel %vm353, %v351, -inf
  %373 = vmax.xlane.f32.xlu0 %v372
  %v374 = vpop.xlane.xlu0 %373
  %v375 = vsel %vm353, %v352, -inf
  %376 = vmax.xlane.f32.xlu0 %v375
  %v377 = vpop.xlane.xlu0 %376
  %v378 = vsub.f32 %v345, %v356
  %v379 = vsub.f32 %v346, %v359
  %v380 = vsub.f32 %v347, %v362
  %v381 = vsub.f32 %v348, %v365
  %v382 = vsub.f32 %v349, %v368
  %v383 = vsub.f32 %v350, %v371
  %v384 = vsub.f32 %v351, %v374
  %v385 = vsub.f32 %v352, %v377
  %v386 = vmul.f32 %v378, 1.442695
  %v387 = vpow.pop %v386
  %v388 = vmul.f32 %v379, 1.442695
  %v389 = vpow.pop %v388
  %v390 = vmul.f32 %v380, 1.442695
  %v391 = vpow.pop %v390
  %v392 = vmul.f32 %v381, 1.442695
  %v393 = vpow.pop %v392
  %v394 = vmul.f32 %v382, 1.442695
  %v395 = vpow.pop %v394
  %v396 = vmul.f32 %v383, 1.442695
  %v397 = vpow.pop %v396
  %v398 = vmul.f32 %v384, 1.442695
  %v399 = vpow.pop %v398
  %v400 = vmul.f32 %v385, 1.442695
  %v401 = vpow.pop %v400
  %v402 = vsel %vm353, %v387, 0.0
  %403 = vadd.xlane.f32.xlu0 %v402
  %v404 = vpop.xlane.xlu0 %403
  %v405 = vsel %vm353, %v389, 0.0
  %406 = vadd.xlane.f32.xlu0 %v405
  %v407 = vpop.xlane.xlu0 %406
  %v408 = vsel %vm353, %v391, 0.0
  %409 = vadd.xlane.f32.xlu0 %v408
  %v410 = vpop.xlane.xlu0 %409
  %v411 = vsel %vm353, %v393, 0.0
  %412 = vadd.xlane.f32.xlu0 %v411
  %v413 = vpop.xlane.xlu0 %412
  %v414 = vsel %vm353, %v395, 0.0
  %415 = vadd.xlane.f32.xlu0 %v414
  %v416 = vpop.xlane.xlu0 %415
  %v417 = vsel %vm353, %v397, 0.0
  %418 = vadd.xlane.f32.xlu0 %v417
  %v419 = vpop.xlane.xlu0 %418
  %v420 = vsel %vm353, %v399, 0.0
  %421 = vadd.xlane.f32.xlu0 %v420
  %v422 = vpop.xlane.xlu0 %421
  %v423 = vsel %vm353, %v401, 0.0
  %424 = vadd.xlane.f32.xlu0 %v423
  %v425 = vpop.xlane.xlu0 %424
  %v426 = vrcp.pop %v404
  %v427 = vrcp.pop %v407
  %v428 = vrcp.pop %v410
  %v429 = vrcp.pop %v413
  %v430 = vrcp.pop %v416
  %v431 = vrcp.pop %v419
  %v432 = vrcp.pop %v422
  %v433 = vrcp.pop %v425
  %v434 = vmul.f32 %v387, %v426
  %v435 = vmul.f32 %v389, %v427
  %v436 = vmul.f32 %v391, %v428
  %v437 = vmul.f32 %v393, %v429
  %v438 = vmul.f32 %v395, %v430
  %v439 = vmul.f32 %v397, %v431
  %v440 = vmul.f32 %v399, %v432
  %v441 = vmul.f32 %v401, %v433
  %v442 = vpack.c.bf16 %v435, %v434
  %v443 = vpack.c.bf16 %v437, %v436
  %v444 = vpack.c.bf16 %v439, %v438
  %v445 = vpack.c.bf16 %v441, %v440
  %v446 = vpack.c.bf16 %v90, %v87
  %v447 = vpack.c.bf16 %v98, %v95
  %v448 = vpack.c.bf16 %v106, %v103
  %v449 = vpack.c.bf16 %v114, %v111
  %v450 = vlaneseq
  %v451 = vshrl.u32 %v450, 7
  %v452 = vsub.s32 0, %v451
  %v453 = vrot.slane %v38, %v452
  %v455 = vsel %vm353, %v442, 0
  %v458 = vsel %vm353, %v443, 0
  %v461 = vsel %vm353, %v444, 0
  %v464 = vsel %vm353, %v445, 0
  %466 = vmatprep.subr.bf16.mxu0 0
  %467 = vmatpush1.bf16.msra.mxu0 %v446
  %468 = vmatprep.subr.bf16.mxu0 0
  %469 = vmatpush1.bf16.msra.mxu0 %v447
  %470 = vmatprep.subr.bf16.mxu0 0
  %471 = vmatpush1.bf16.msra.mxu0 %v448
  %472 = vmatprep.subr.bf16.mxu0 0
  %473 = vmatpush1.bf16.msra.mxu0 %v449
  %474 = vmatprep.subr.bf16.mxu0 0
  %475 = vmatpush1.bf16.msra.mxu0 0
  %476 = vmatprep.subr.bf16.mxu0 0
  %477 = vmatpush1.bf16.msra.mxu0 0
  %478 = vmatprep.subr.bf16.mxu0 0
  %479 = vmatpush1.bf16.msra.mxu0 0
  %480 = vmatprep.subr.bf16.mxu0 0
  %481 = vmatpush1.bf16.msra.mxu0 0
  %482 = vmatprep.subr.bf16.mxu0 0
  %483 = vmatpush1.bf16.msra.mxu0 0
  %484 = vmatprep.subr.bf16.mxu0 0
  %485 = vmatpush1.bf16.msra.mxu0 0
  %486 = vmatprep.subr.bf16.mxu0 0
  %487 = vmatpush1.bf16.msra.mxu0 0
  %488 = vmatprep.subr.bf16.mxu0 0
  %489 = vmatpush1.bf16.msra.mxu0 0
  %490 = vmatprep.subr.bf16.mxu0 0
  %491 = vmatpush1.bf16.msra.mxu0 0
  %492 = vmatprep.subr.bf16.mxu0 0
  %493 = vmatpush1.bf16.msra.mxu0 0
  %494 = vmatprep.subr.bf16.mxu0 0
  %495 = vmatpush1.bf16.msra.mxu0 0
  %496 = vmatprep.subr.bf16.mxu0 0
  %497 = vmatpush1.bf16.msra.mxu0 0
  %498 = vmatprep.mubr.bf16.mxu0 0
  %499 = vmatmul.mubr.bf16.gmra.mrb[0].mxu0 %v455
  %v500 = vpop.f32.mrb[0].mxu0
  %v501 = vadd.f32 %v453, %v500
  %v502 = vpop.f32.mrb[0].mxu0
  %v503 = vpop.f32.mrb[0].mxu0
  %v504 = vadd.f32 %v453, %v503
  %v505 = vpop.f32.mrb[0].mxu0
  %506 = vmatprep.mubr.bf16.mxu0 0
  %507 = vmatmul.mubr.bf16.gmra.mrb[0].mxu0 %v458
  %v508 = vpop.f32.mrb[0].mxu0
  %v509 = vadd.f32 %v453, %v508
  %v510 = vpop.f32.mrb[0].mxu0
  %v511 = vpop.f32.mrb[0].mxu0
  %v512 = vadd.f32 %v453, %v511
  %v513 = vpop.f32.mrb[0].mxu0
  %514 = vmatprep.mubr.bf16.mxu0 0
  %515 = vmatmul.mubr.bf16.gmra.mrb[0].mxu0 %v461
  %v516 = vpop.f32.mrb[0].mxu0
  %v517 = vadd.f32 %v453, %v516
  %v518 = vpop.f32.mrb[0].mxu0
  %v519 = vpop.f32.mrb[0].mxu0
  %v520 = vadd.f32 %v453, %v519
  %v521 = vpop.f32.mrb[0].mxu0
  %522 = vmatprep.mubr.bf16.mxu0 0
  %523 = vmatmul.mubr.bf16.gmra.mrb[0].mxu0 %v464
  %v524 = vpop.f32.mrb[0].mxu0
  %v525 = vadd.f32 %v453, %v524
  %v526 = vpop.f32.mrb[0].mxu0
  %v527 = vpop.f32.mrb[0].mxu0
  %v528 = vadd.f32 %v453, %v527
  %v529 = vpop.f32.mrb[0].mxu0
  %530 = vdwg.mxu0
  %vm531 = vcmp.gt.f32.partialorder %v501, 0.0
  %vm532 = vcmp.gt.f32.partialorder %v504, 0.0
  %vm533 = vcmp.gt.f32.partialorder %v509, 0.0
  %vm534 = vcmp.gt.f32.partialorder %v512, 0.0
  %vm535 = vcmp.gt.f32.partialorder %v517, 0.0
  %vm536 = vcmp.gt.f32.partialorder %v520, 0.0
  %vm537 = vcmp.gt.f32.partialorder %v525, 0.0
  %vm538 = vcmp.gt.f32.partialorder %v528, 0.0
  %v539 = vmin.f32 %v501, 0.0
  %v540 = vmin.f32 %v504, 0.0
  %v541 = vmin.f32 %v509, 0.0
  %v542 = vmin.f32 %v512, 0.0
  %v543 = vmin.f32 %v517, 0.0
  %v544 = vmin.f32 %v520, 0.0
  %v545 = vmin.f32 %v525, 0.0
  %v546 = vmin.f32 %v528, 0.0
  %v547 = vmul.f32 %v539, 1.442695
  %v548 = vpow.pop %v547
  %v549 = vmul.f32 %v540, 1.442695
  %v550 = vpow.pop %v549
  %v551 = vmul.f32 %v541, 1.442695
  %v552 = vpow.pop %v551
  %v553 = vmul.f32 %v542, 1.442695
  %v554 = vpow.pop %v553
  %v555 = vmul.f32 %v543, 1.442695
  %v556 = vpow.pop %v555
  %v557 = vmul.f32 %v544, 1.442695
  %v558 = vpow.pop %v557
  %v559 = vmul.f32 %v545, 1.442695
  %v560 = vpow.pop %v559
  %v561 = vmul.f32 %v546, 1.442695
  %v562 = vpow.pop %v561
  %v563 = vsub.f32 %v548, 1.0
  %v564 = vsub.f32 %v550, 1.0
  %v565 = vsub.f32 %v552, 1.0
  %v566 = vsub.f32 %v554, 1.0
  %v567 = vsub.f32 %v556, 1.0
  %v568 = vsub.f32 %v558, 1.0
  %v569 = vsub.f32 %v560, 1.0
  %v570 = vsub.f32 %v562, 1.0
  %v571 = vsel %vm531, %v501, %v563
  %v572 = vsel %vm532, %v504, %v564
  %v573 = vsel %vm533, %v509, %v565
  %v574 = vsel %vm534, %v512, %v566
  %v575 = vsel %vm535, %v517, %v567
  %v576 = vsel %vm536, %v520, %v568
  %v577 = vsel %vm537, %v525, %v569
  %v578 = vsel %vm538, %v528, %v570
  %v579 = vpack.c.bf16 %v572, %v571
  %v580 = vpack.c.bf16 %v574, %v573
  %v581 = vpack.c.bf16 %v576, %v575
  %v582 = vpack.c.bf16 %v578, %v577
  %v583 = vld [vmem:[%s2 + $0x13] sm:$0xff]
  %v584 = vld [vmem:[%s2 + $0x1b] sm:$0xff]
  %v585 = vld [vmem:[%s2 + $0x23] sm:$0xff]
  %v586 = vld [vmem:[%s2 + $0x2b] sm:$0xff]
  %v587 = vpack.c.bf16 %v584, %v583
  %v588 = vpack.c.bf16 %v586, %v585
  %v589 = vld [vmem:[%s2 + $0x33] sm:$0x1]
  %v590 = vld [vmem:[%s2 + $0x34] sm:$0x1]
  %v591 = vld [vmem:[%s2 + $0x35] sm:$0x1]
  %v593 = vsel %vm129, %v579, 0
  %v596 = vsel %vm129, %v580, 0
  %v599 = vsel %vm129, %v581, 0
  %v602 = vsel %vm129, %v582, 0
  %604 = vmatprep.subr.bf16.mxu0 0
  %605 = vmatpush1.bf16.msra.mxu0 %v587
  %606 = vmatprep.subr.bf16.mxu0 0
  %607 = vmatpush1.bf16.msra.mxu0 %v588
  %608 = vmatprep.subr.bf16.mxu0 0
  %609 = vmatpush1.bf16.msra.mxu0 0
  %610 = vmatprep.subr.bf16.mxu0 0
  %611 = vmatpush1.bf16.msra.mxu0 0
  %612 = vmatprep.subr.bf16.mxu0 0
  %613 = vmatpush1.bf16.msra.mxu0 0
  %614 = vmatprep.subr.bf16.mxu0 0
  %615 = vmatpush1.bf16.msra.mxu0 0
  %616 = vmatprep.subr.bf16.mxu0 0
  %617 = vmatpush1.bf16.msra.mxu0 0
  %618 = vmatprep.subr.bf16.mxu0 0
  %619 = vmatpush1.bf16.msra.mxu0 0
  %620 = vmatprep.subr.bf16.mxu0 0
  %621 = vmatpush1.bf16.msra.mxu0 0
  %622 = vmatprep.subr.bf16.mxu0 0
  %623 = vmatpush1.bf16.msra.mxu0 0
  %624 = vmatprep.subr.bf16.mxu0 0
  %625 = vmatpush1.bf16.msra.mxu0 0
  %626 = vmatprep.subr.bf16.mxu0 0
  %627 = vmatpush1.bf16.msra.mxu0 0
  %628 = vmatprep.subr.bf16.mxu0 0
  %629 = vmatpush1.bf16.msra.mxu0 0
  %630 = vmatprep.subr.bf16.mxu0 0
  %631 = vmatpush1.bf16.msra.mxu0 0
  %632 = vmatprep.subr.bf16.mxu0 0
  %633 = vmatpush1.bf16.msra.mxu0 0
  %634 = vmatprep.subr.bf16.mxu0 0
  %635 = vmatpush1.bf16.msra.mxu0 0
  %636 = vmatprep.mubr.bf16.mxu0 0
  %637 = vmatmul.mubr.bf16.gmra.mrb[0].mxu0 %v593
  %v638 = vpop.f32.mrb[0].mxu0
  %v639 = vadd.f32 0.0, %v638
  %v640 = vpop.f32.mrb[0].mxu0
  %v641 = vpop.f32.mrb[0].mxu0
  %v642 = vadd.f32 0.0, %v641
  %v643 = vpop.f32.mrb[0].mxu0
  %644 = vmatprep.mubr.bf16.mxu0 0
  %645 = vmatmul.mubr.bf16.gmra.mrb[0].mxu0 %v596
  %v646 = vpop.f32.mrb[0].mxu0
  %v647 = vadd.f32 0.0, %v646
  %v648 = vpop.f32.mrb[0].mxu0
  %v649 = vpop.f32.mrb[0].mxu0
  %v650 = vadd.f32 0.0, %v649
  %v651 = vpop.f32.mrb[0].mxu0
  %652 = vmatprep.mubr.bf16.mxu0 0
  %653 = vmatmul.mubr.bf16.gmra.mrb[0].mxu0 %v599
  %v654 = vpop.f32.mrb[0].mxu0
  %v655 = vadd.f32 0.0, %v654
  %v656 = vpop.f32.mrb[0].mxu0
  %v657 = vpop.f32.mrb[0].mxu0
  %v658 = vadd.f32 0.0, %v657
  %v659 = vpop.f32.mrb[0].mxu0
  %660 = vmatprep.mubr.bf16.mxu0 0
  %661 = vmatmul.mubr.bf16.gmra.mrb[0].mxu0 %v602
  %v662 = vpop.f32.mrb[0].mxu0
  %v663 = vadd.f32 0.0, %v662
  %v664 = vpop.f32.mrb[0].mxu0
  %v665 = vpop.f32.mrb[0].mxu0
  %v666 = vadd.f32 0.0, %v665
  %v667 = vpop.f32.mrb[0].mxu0
  %668 = vdwg.mxu0
  %v669 = vlaneseq
  %v670 = vshrl.u32 %v669, 7
  %v671 = vsub.s32 0, %v670
  %v672 = vrot.slane %v589, %v671
  %v673 = vmul.f32 %v639, %v672
  %v674 = vmul.f32 %v642, %v672
  %v675 = vmul.f32 %v647, %v672
  %v676 = vmul.f32 %v650, %v672
  %v677 = vmul.f32 %v655, %v672
  %v678 = vmul.f32 %v658, %v672
  %v679 = vmul.f32 %v663, %v672
  %v680 = vmul.f32 %v666, %v672
  %vm681 = vcmask 64512
  %v682 = vsel %vm681, %v673, 0.0
  %683 = vadd.xlane.f32.xlu0 %v682
  %v684 = vpop.xlane.xlu0 %683
  %v685 = vsel %vm681, %v674, 0.0
  %686 = vadd.xlane.f32.xlu0 %v685
  %v687 = vpop.xlane.xlu0 %686
  %v688 = vsel %vm681, %v675, 0.0
  %689 = vadd.xlane.f32.xlu0 %v688
  %v690 = vpop.xlane.xlu0 %689
  %v691 = vsel %vm681, %v676, 0.0
  %692 = vadd.xlane.f32.xlu0 %v691
  %v693 = vpop.xlane.xlu0 %692
  %v694 = vsel %vm681, %v677, 0.0
  %695 = vadd.xlane.f32.xlu0 %v694
  %v696 = vpop.xlane.xlu0 %695
  %v697 = vsel %vm681, %v678, 0.0
  %698 = vadd.xlane.f32.xlu0 %v697
  %v699 = vpop.xlane.xlu0 %698
  %v700 = vsel %vm681, %v679, 0.0
  %701 = vadd.xlane.f32.xlu0 %v700
  %v702 = vpop.xlane.xlu0 %701
  %v703 = vsel %vm681, %v680, 0.0
  %704 = vadd.xlane.f32.xlu0 %v703
  %v705 = vpop.xlane.xlu0 %704
  %v707 = vsel %vm681, %v590, 0
  %v710 = vsel %vm681, %v639, 0
  %v713 = vsel %vm681, %v642, 0
  %v716 = vsel %vm681, %v647, 0
  %v719 = vsel %vm681, %v650, 0
  %v722 = vsel %vm681, %v655, 0
  %v725 = vsel %vm681, %v658, 0
  %v728 = vsel %vm681, %v663, 0
  %v731 = vsel %vm681, %v666, 0
  %733 = vmatprep.subr.mxu0 0.0
  %734 = vmatpush1.xpose.msra.mxu0 %v710
  %735 = vmatprep.subr.mxu0 0.0
  %736 = vmatpush1.xpose.msra.mxu0 %v713
  %737 = vmatprep.subr.mxu0 0.0
  %738 = vmatpush1.xpose.msra.mxu0 %v716
  %739 = vmatprep.subr.mxu0 0.0
  %740 = vmatpush1.xpose.msra.mxu0 %v719
  %741 = vmatprep.subr.mxu0 0.0
  %742 = vmatpush1.xpose.msra.mxu0 %v722
  %743 = vmatprep.subr.mxu0 0.0
  %744 = vmatpush1.xpose.msra.mxu0 %v725
  %745 = vmatprep.subr.mxu0 0.0
  %746 = vmatpush1.xpose.msra.mxu0 %v728
  %747 = vmatprep.subr.mxu0 0.0
  %748 = vmatpush1.xpose.msra.mxu0 %v731
  %749 = vmatprep.subr.mxu0 0.0
  %750 = vmatpush1.xpose.msra.mxu0 0.0
  %751 = vmatprep.subr.mxu0 0.0
  %752 = vmatpush1.xpose.msra.mxu0 0.0
  %753 = vmatprep.subr.mxu0 0.0
  %754 = vmatpush1.xpose.msra.mxu0 0.0
  %755 = vmatprep.subr.mxu0 0.0
  %756 = vmatpush1.xpose.msra.mxu0 0.0
  %757 = vmatprep.subr.mxu0 0.0
  %758 = vmatpush1.xpose.msra.mxu0 0.0
  %759 = vmatprep.subr.mxu0 0.0
  %760 = vmatpush1.xpose.msra.mxu0 0.0
  %761 = vmatprep.subr.mxu0 0.0
  %762 = vmatpush1.xpose.msra.mxu0 0.0
  %763 = vmatprep.subr.mxu0 0.0
  %764 = vmatpush1.xpose.msra.mxu0 0.0
  %765 = vmatprep.subr.mxu0 0.0
  %766 = vmatpush1.xpose.msra.mxu0 0.0
  %767 = vmatprep.subr.mxu0 0.0
  %768 = vmatpush1.xpose.msra.mxu0 0.0
  %769 = vmatprep.subr.mxu0 0.0
  %770 = vmatpush1.xpose.msra.mxu0 0.0
  %771 = vmatprep.subr.mxu0 0.0
  %772 = vmatpush1.xpose.msra.mxu0 0.0
  %773 = vmatprep.subr.mxu0 0.0
  %774 = vmatpush1.xpose.msra.mxu0 0.0
  %775 = vmatprep.subr.mxu0 0.0
  %776 = vmatpush1.xpose.msra.mxu0 0.0
  %777 = vmatprep.subr.mxu0 0.0
  %778 = vmatpush1.xpose.msra.mxu0 0.0
  %779 = vmatprep.subr.mxu0 0.0
  %780 = vmatpush1.xpose.msra.mxu0 0.0
  %781 = vmatprep.subr.mxu0 0.0
  %782 = vmatpush1.xpose.msra.mxu0 0.0
  %783 = vmatprep.subr.mxu0 0.0
  %784 = vmatpush1.xpose.msra.mxu0 0.0
  %785 = vmatprep.subr.mxu0 0.0
  %786 = vmatpush1.xpose.msra.mxu0 0.0
  %787 = vmatprep.subr.mxu0 0.0
  %788 = vmatpush1.xpose.msra.mxu0 0.0
  %789 = vmatprep.subr.mxu0 0.0
  %790 = vmatpush1.xpose.msra.mxu0 0.0
  %791 = vmatprep.subr.mxu0 0.0
  %792 = vmatpush1.xpose.msra.mxu0 0.0
  %793 = vmatprep.subr.mxu0 0.0
  %794 = vmatpush1.xpose.msra.mxu0 0.0
  %795 = vmatprep.subr.mxu0 0.0
  %796 = vmatpush1.xpose.msra.mxu0 0.0
  %797 = vmatprep.mubr.f32.mxu0 0.0
  %798 = vmatmul.mubr.f32.gmra.mrb[0].mxu0 %v707
  %v799 = vpop.f32.mrb[0].mxu0
  %v800 = vadd.f32 0.0, %v799
  %v801 = vpop.f32.mrb[0].mxu0
  %802 = vdwg.mxu0
  %v803 = vlaneseq
  %v804 = vshrl.u32 %v803, 7
  %v805 = vsub.s32 0, %v804
  %v806 = vrot.slane %v800, %v805
  %v807 = vadd.f32 %v684, %v806
  %v808 = vadd.f32 %v687, %v806
  %v809 = vadd.f32 %v690, %v806
  %v810 = vadd.f32 %v693, %v806
  %v811 = vadd.f32 %v696, %v806
  %v812 = vadd.f32 %v699, %v806
  %v813 = vadd.f32 %v702, %v806
  %v814 = vadd.f32 %v705, %v806
  %vm815 = vcmp.gt.f32.partialorder %v807, 0.0
  %vm816 = vcmp.gt.f32.partialorder %v808, 0.0
  %vm817 = vcmp.gt.f32.partialorder %v809, 0.0
  %vm818 = vcmp.gt.f32.partialorder %v810, 0.0
  %vm819 = vcmp.gt.f32.partialorder %v811, 0.0
  %vm820 = vcmp.gt.f32.partialorder %v812, 0.0
  %vm821 = vcmp.gt.f32.partialorder %v813, 0.0
  %vm822 = vcmp.gt.f32.partialorder %v814, 0.0
  %v823 = vmul.f32 %v807, 0.2
  %v824 = vmul.f32 %v808, 0.2
  %v825 = vmul.f32 %v809, 0.2
  %v826 = vmul.f32 %v810, 0.2
  %v827 = vmul.f32 %v811, 0.2
  %v828 = vmul.f32 %v812, 0.2
  %v829 = vmul.f32 %v813, 0.2
  %v830 = vmul.f32 %v814, 0.2
  %v831 = vsel %vm815, %v807, %v823
  %v832 = vsel %vm816, %v808, %v824
  %v833 = vsel %vm817, %v809, %v825
  %v834 = vsel %vm818, %v810, %v826
  %v835 = vsel %vm819, %v811, %v827
  %v836 = vsel %vm820, %v812, %v828
  %v837 = vsel %vm821, %v813, %v829
  %v838 = vsel %vm822, %v814, %v830
  %v839 = vsel %vm337, %v831, -1e+30
  %v840 = vsel %vm338, %v832, -1e+30
  %v841 = vsel %vm339, %v833, -1e+30
  %v842 = vsel %vm340, %v834, -1e+30
  %v843 = vsel %vm341, %v835, -1e+30
  %v844 = vsel %vm342, %v836, -1e+30
  %v845 = vsel %vm343, %v837, -1e+30
  %v846 = vsel %vm344, %v838, -1e+30
  %v847 = vsel %vm353, %v839, -inf
  %848 = vmax.xlane.f32.xlu0 %v847
  %v849 = vpop.xlane.xlu0 %848
  %v850 = vsel %vm353, %v840, -inf
  %851 = vmax.xlane.f32.xlu0 %v850
  %v852 = vpop.xlane.xlu0 %851
  %v853 = vsel %vm353, %v841, -inf
  %854 = vmax.xlane.f32.xlu0 %v853
  %v855 = vpop.xlane.xlu0 %854
  %v856 = vsel %vm353, %v842, -inf
  %857 = vmax.xlane.f32.xlu0 %v856
  %v858 = vpop.xlane.xlu0 %857
  %v859 = vsel %vm353, %v843, -inf
  %860 = vmax.xlane.f32.xlu0 %v859
  %v861 = vpop.xlane.xlu0 %860
  %v862 = vsel %vm353, %v844, -inf
  %863 = vmax.xlane.f32.xlu0 %v862
  %v864 = vpop.xlane.xlu0 %863
  %v865 = vsel %vm353, %v845, -inf
  %866 = vmax.xlane.f32.xlu0 %v865
  %v867 = vpop.xlane.xlu0 %866
  %v868 = vsel %vm353, %v846, -inf
  %869 = vmax.xlane.f32.xlu0 %v868
  %v870 = vpop.xlane.xlu0 %869
  %v871 = vsub.f32 %v839, %v849
  %v872 = vsub.f32 %v840, %v852
  %v873 = vsub.f32 %v841, %v855
  %v874 = vsub.f32 %v842, %v858
  %v875 = vsub.f32 %v843, %v861
  %v876 = vsub.f32 %v844, %v864
  %v877 = vsub.f32 %v845, %v867
  %v878 = vsub.f32 %v846, %v870
  %v879 = vmul.f32 %v871, 1.442695
  %v880 = vpow.pop %v879
  %v881 = vmul.f32 %v872, 1.442695
  %v882 = vpow.pop %v881
  %v883 = vmul.f32 %v873, 1.442695
  %v884 = vpow.pop %v883
  %v885 = vmul.f32 %v874, 1.442695
  %v886 = vpow.pop %v885
  %v887 = vmul.f32 %v875, 1.442695
  %v888 = vpow.pop %v887
  %v889 = vmul.f32 %v876, 1.442695
  %v890 = vpow.pop %v889
  %v891 = vmul.f32 %v877, 1.442695
  %v892 = vpow.pop %v891
  %v893 = vmul.f32 %v878, 1.442695
  %v894 = vpow.pop %v893
  %v895 = vsel %vm353, %v880, 0.0
  %896 = vadd.xlane.f32.xlu0 %v895
  %v897 = vpop.xlane.xlu0 %896
  %v898 = vsel %vm353, %v882, 0.0
  %899 = vadd.xlane.f32.xlu0 %v898
  %v900 = vpop.xlane.xlu0 %899
  %v901 = vsel %vm353, %v884, 0.0
  %902 = vadd.xlane.f32.xlu0 %v901
  %v903 = vpop.xlane.xlu0 %902
  %v904 = vsel %vm353, %v886, 0.0
  %905 = vadd.xlane.f32.xlu0 %v904
  %v906 = vpop.xlane.xlu0 %905
  %v907 = vsel %vm353, %v888, 0.0
  %908 = vadd.xlane.f32.xlu0 %v907
  %v909 = vpop.xlane.xlu0 %908
  %v910 = vsel %vm353, %v890, 0.0
  %911 = vadd.xlane.f32.xlu0 %v910
  %v912 = vpop.xlane.xlu0 %911
  %v913 = vsel %vm353, %v892, 0.0
  %914 = vadd.xlane.f32.xlu0 %v913
  %v915 = vpop.xlane.xlu0 %914
  %v916 = vsel %vm353, %v894, 0.0
  %917 = vadd.xlane.f32.xlu0 %v916
  %v918 = vpop.xlane.xlu0 %917
  %v919 = vrcp.pop %v897
  %v920 = vrcp.pop %v900
  %v921 = vrcp.pop %v903
  %v922 = vrcp.pop %v906
  %v923 = vrcp.pop %v909
  %v924 = vrcp.pop %v912
  %v925 = vrcp.pop %v915
  %v926 = vrcp.pop %v918
  %v927 = vmul.f32 %v880, %v919
  %v928 = vmul.f32 %v882, %v920
  %v929 = vmul.f32 %v884, %v921
  %v930 = vmul.f32 %v886, %v922
  %v931 = vmul.f32 %v888, %v923
  %v932 = vmul.f32 %v890, %v924
  %v933 = vmul.f32 %v892, %v925
  %v934 = vmul.f32 %v894, %v926
  %v935 = vpack.c.bf16 %v928, %v927
  %v936 = vpack.c.bf16 %v930, %v929
  %v937 = vpack.c.bf16 %v932, %v931
  %v938 = vpack.c.bf16 %v934, %v933
  %v939 = vpack.c.bf16 %v642, %v639
  %v940 = vpack.c.bf16 %v650, %v647
  %v941 = vpack.c.bf16 %v658, %v655
  %v942 = vpack.c.bf16 %v666, %v663
  %v943 = vlaneseq
  %v944 = vshrl.u32 %v943, 7
  %v945 = vsub.s32 0, %v944
  %v946 = vrot.slane %v591, %v945
  %v948 = vsel %vm353, %v935, 0
  %v951 = vsel %vm353, %v936, 0
  %v954 = vsel %vm353, %v937, 0
  %v957 = vsel %vm353, %v938, 0
  %959 = vmatprep.subr.bf16.mxu0 0
  %960 = vmatpush1.bf16.msra.mxu0 %v939
  %961 = vmatprep.subr.bf16.mxu0 0
  %962 = vmatpush1.bf16.msra.mxu0 %v940
  %963 = vmatprep.subr.bf16.mxu0 0
  %964 = vmatpush1.bf16.msra.mxu0 %v941
  %965 = vmatprep.subr.bf16.mxu0 0
  %966 = vmatpush1.bf16.msra.mxu0 %v942
  %967 = vmatprep.subr.bf16.mxu0 0
  %968 = vmatpush1.bf16.msra.mxu0 0
  %969 = vmatprep.subr.bf16.mxu0 0
  %970 = vmatpush1.bf16.msra.mxu0 0
  %971 = vmatprep.subr.bf16.mxu0 0
  %972 = vmatpush1.bf16.msra.mxu0 0
  %973 = vmatprep.subr.bf16.mxu0 0
  %974 = vmatpush1.bf16.msra.mxu0 0
  %975 = vmatprep.subr.bf16.mxu0 0
  %976 = vmatpush1.bf16.msra.mxu0 0
  %977 = vmatprep.subr.bf16.mxu0 0
  %978 = vmatpush1.bf16.msra.mxu0 0
  %979 = vmatprep.subr.bf16.mxu0 0
  %980 = vmatpush1.bf16.msra.mxu0 0
  %981 = vmatprep.subr.bf16.mxu0 0
  %982 = vmatpush1.bf16.msra.mxu0 0
  %983 = vmatprep.subr.bf16.mxu0 0
  %984 = vmatpush1.bf16.msra.mxu0 0
  %985 = vmatprep.subr.bf16.mxu0 0
  %986 = vmatpush1.bf16.msra.mxu0 0
  %987 = vmatprep.subr.bf16.mxu0 0
  %988 = vmatpush1.bf16.msra.mxu0 0
  %989 = vmatprep.subr.bf16.mxu0 0
  %990 = vmatpush1.bf16.msra.mxu0 0
  %991 = vmatprep.mubr.bf16.mxu0 0
  %992 = vmatmul.mubr.bf16.gmra.mrb[0].mxu0 %v948
  %v993 = vpop.f32.mrb[0].mxu0
  %v994 = vadd.f32 %v946, %v993
  %v995 = vpop.f32.mrb[0].mxu0
  %v996 = vpop.f32.mrb[0].mxu0
  %v997 = vadd.f32 %v946, %v996
  %v998 = vpop.f32.mrb[0].mxu0
  %999 = vmatprep.mubr.bf16.mxu0 0
  %1000 = vmatmul.mubr.bf16.gmra.mrb[0].mxu0 %v951
  %v1001 = vpop.f32.mrb[0].mxu0
  %v1002 = vadd.f32 %v946, %v1001
  %v1003 = vpop.f32.mrb[0].mxu0
  %v1004 = vpop.f32.mrb[0].mxu0
  %v1005 = vadd.f32 %v946, %v1004
  %v1006 = vpop.f32.mrb[0].mxu0
  %1007 = vmatprep.mubr.bf16.mxu0 0
  %1008 = vmatmul.mubr.bf16.gmra.mrb[0].mxu0 %v954
  %v1009 = vpop.f32.mrb[0].mxu0
  %v1010 = vadd.f32 %v946, %v1009
  %v1011 = vpop.f32.mrb[0].mxu0
  %v1012 = vpop.f32.mrb[0].mxu0
  %v1013 = vadd.f32 %v946, %v1012
  %v1014 = vpop.f32.mrb[0].mxu0
  %1015 = vmatprep.mubr.bf16.mxu0 0
  %1016 = vmatmul.mubr.bf16.gmra.mrb[0].mxu0 %v957
  %v1017 = vpop.f32.mrb[0].mxu0
  %v1018 = vadd.f32 %v946, %v1017
  %v1019 = vpop.f32.mrb[0].mxu0
  %v1020 = vpop.f32.mrb[0].mxu0
  %v1021 = vadd.f32 %v946, %v1020
  %v1022 = vpop.f32.mrb[0].mxu0
  %1023 = vdwg.mxu0
  %v1024 = vsel %vm681, %v994, -inf
  %1025 = vmax.xlane.f32.xlu0 %v1024
  %v1026 = vpop.xlane.xlu0 %1025
  %v1027 = vsel %vm681, %v997, -inf
  %1028 = vmax.xlane.f32.xlu0 %v1027
  %v1029 = vpop.xlane.xlu0 %1028
  %v1030 = vsel %vm681, %v1002, -inf
  %1031 = vmax.xlane.f32.xlu0 %v1030
  %v1032 = vpop.xlane.xlu0 %1031
  %v1033 = vsel %vm681, %v1005, -inf
  %1034 = vmax.xlane.f32.xlu0 %v1033
  %v1035 = vpop.xlane.xlu0 %1034
  %v1036 = vsel %vm681, %v1010, -inf
  %1037 = vmax.xlane.f32.xlu0 %v1036
  %v1038 = vpop.xlane.xlu0 %1037
  %v1039 = vsel %vm681, %v1013, -inf
  %1040 = vmax.xlane.f32.xlu0 %v1039
  %v1041 = vpop.xlane.xlu0 %1040
  %v1042 = vsel %vm681, %v1018, -inf
  %1043 = vmax.xlane.f32.xlu0 %v1042
  %v1044 = vpop.xlane.xlu0 %1043
  %v1045 = vsel %vm681, %v1021, -inf
  %1046 = vmax.xlane.f32.xlu0 %v1045
  %v1047 = vpop.xlane.xlu0 %1046
  %v1048 = vsub.f32 %v994, %v1026
  %v1049 = vsub.f32 %v997, %v1029
  %v1050 = vsub.f32 %v1002, %v1032
  %v1051 = vsub.f32 %v1005, %v1035
  %v1052 = vsub.f32 %v1010, %v1038
  %v1053 = vsub.f32 %v1013, %v1041
  %v1054 = vsub.f32 %v1018, %v1044
  %v1055 = vsub.f32 %v1021, %v1047
  %v1056 = vmul.f32 %v1048, 1.442695
  %v1057 = vpow.pop %v1056
  %v1058 = vmul.f32 %v1049, 1.442695
  %v1059 = vpow.pop %v1058
  %v1060 = vmul.f32 %v1050, 1.442695
  %v1061 = vpow.pop %v1060
  %v1062 = vmul.f32 %v1051, 1.442695
  %v1063 = vpow.pop %v1062
  %v1064 = vmul.f32 %v1052, 1.442695
  %v1065 = vpow.pop %v1064
  %v1066 = vmul.f32 %v1053, 1.442695
  %v1067 = vpow.pop %v1066
  %v1068 = vmul.f32 %v1054, 1.442695
  %v1069 = vpow.pop %v1068
  %v1070 = vmul.f32 %v1055, 1.442695
  %v1071 = vpow.pop %v1070
  %v1072 = vsel %vm681, %v1057, 0.0
  %1073 = vadd.xlane.f32.xlu0 %v1072
  %v1074 = vpop.xlane.xlu0 %1073
  %v1075 = vsel %vm681, %v1059, 0.0
  %1076 = vadd.xlane.f32.xlu0 %v1075
  %v1077 = vpop.xlane.xlu0 %1076
  %v1078 = vsel %vm681, %v1061, 0.0
  %1079 = vadd.xlane.f32.xlu0 %v1078
  %v1080 = vpop.xlane.xlu0 %1079
  %v1081 = vsel %vm681, %v1063, 0.0
  %1082 = vadd.xlane.f32.xlu0 %v1081
  %v1083 = vpop.xlane.xlu0 %1082
  %v1084 = vsel %vm681, %v1065, 0.0
  %1085 = vadd.xlane.f32.xlu0 %v1084
  %v1086 = vpop.xlane.xlu0 %1085
  %v1087 = vsel %vm681, %v1067, 0.0
  %1088 = vadd.xlane.f32.xlu0 %v1087
  %v1089 = vpop.xlane.xlu0 %1088
  %v1090 = vsel %vm681, %v1069, 0.0
  %1091 = vadd.xlane.f32.xlu0 %v1090
  %v1092 = vpop.xlane.xlu0 %1091
  %v1093 = vsel %vm681, %v1071, 0.0
  %1094 = vadd.xlane.f32.xlu0 %v1093
  %v1095 = vpop.xlane.xlu0 %1094
  %v1096 = vlog2.pop %v1074
  %v1097 = vmul.f32 %v1096, 0.6931472
  %v1098 = vlog2.pop %v1077
  %v1099 = vmul.f32 %v1098, 0.6931472
  %v1100 = vlog2.pop %v1080
  %v1101 = vmul.f32 %v1100, 0.6931472
  %v1102 = vlog2.pop %v1083
  %v1103 = vmul.f32 %v1102, 0.6931472
  %v1104 = vlog2.pop %v1086
  %v1105 = vmul.f32 %v1104, 0.6931472
  %v1106 = vlog2.pop %v1089
  %v1107 = vmul.f32 %v1106, 0.6931472
  %v1108 = vlog2.pop %v1092
  %v1109 = vmul.f32 %v1108, 0.6931472
  %v1110 = vlog2.pop %v1095
  %v1111 = vmul.f32 %v1110, 0.6931472
  %v1112 = vsub.f32 %v1048, %v1097
  %v1113 = vsub.f32 %v1049, %v1099
  %v1114 = vsub.f32 %v1050, %v1101
  %v1115 = vsub.f32 %v1051, %v1103
  %v1116 = vsub.f32 %v1052, %v1105
  %v1117 = vsub.f32 %v1053, %v1107
  %v1118 = vsub.f32 %v1054, %v1109
  %v1119 = vsub.f32 %v1055, %v1111
  %1120 = vst.msk [vmem:[%s3] sm:$0xff] %vm681, %v1112
  %1121 = vst.msk [vmem:[%s3 + $0x8] sm:$0xff] %vm681, %v1113
  %1122 = vst.msk [vmem:[%s3 + $0x10] sm:$0xff] %vm681, %v1114
  %1123 = vst.msk [vmem:[%s3 + $0x18] sm:$0xff] %vm681, %v1115
  %1124 = vst.msk [vmem:[%s3 + $0x20] sm:$0xff] %vm681, %v1116
  %1125 = vst.msk [vmem:[%s3 + $0x28] sm:$0xff] %vm681, %v1117
  %1126 = vst.msk [vmem:[%s3 + $0x30] sm:$0xff] %vm681, %v1118
  %1127 = vst.msk [vmem:[%s3 + $0x38] sm:$0xff] %vm681, %v1119
  // Predicated region
  $region14: #{tpu_custom_call.1} parent=0 // pred_check
    _
  $region15: #{tpu_custom_call.1} parent=0 // pred_check_branch
    %1129 = sbr.rel (0) target = $region17
  $region16: #{tpu_custom_call.1} parent=0 // pred_region
    _
  $region17: #{tpu_custom_call.1} parent=0 // pred_fallthru
    _
  // Predicated region
  $region18: #{tpu_custom_call.1} parent=0 // pred_check
    _
  $region19: #{tpu_custom_call.1} parent=0 // pred_check_branch
    %1131 = sbr.rel (0) target = $region21
  $region20: #{tpu_custom_call.1} parent=0 // pred_region
    _
  $region21: #{tpu_custom_call.1} parent=0 // pred_fallthru
    _

</llo_original>
